<compile_context>
chip_gen: v7x
topology: tpu7x:2x2x1
jax: 0.10.0
libtpu: 0.0.40
codegen_flags: <defaults>
</compile_context>

<pallas_src>
import jax
import jax.numpy as jnp
from jax.experimental import pallas as pl
from jax.experimental.pallas import tpu as pltpu


def _transition_kernel(scale_ref, shift_ref, w_ref, x_ref, pool_ref, o_ref):
    # scale_ref: (Cin,)          SMEM  fused BN scale = gamma / sqrt(var + eps)
    # shift_ref: (Cin,)          SMEM  fused BN shift = beta - mean * scale
    # w_ref:     (Cout*Cin,)     SMEM  1x1 conv weight (row-major, pre-scaled 0.25)
    # x_ref:     (N, Cin*H*W)    VMEM  flattened NCHW input (contiguous reshape)
    # pool_ref:  (H*W, Hh*Wh)    VMEM  0/1 pool + lane-compaction matrix
    # o_ref:     (N, Cout*Hh*Wh) VMEM  lane-dense output (128 lanes wide)
    hw, hhwh = pool_ref.shape
    cin = x_ref.shape[1] // hw
    cout = o_ref.shape[1] // hhwh

    pool = pool_ref[...]                                   # (H*W, Hh*Wh)

    # BatchNorm (inference) + ReLU, one full-lane-width slab per input channel.
    ys = []
    for ci in range(cin):
        xc = x_ref[:, ci * hw:(ci + 1) * hw]               # (N, H*W), 128-aligned
        ys.append(jnp.maximum(xc * scale_ref[ci] + shift_ref[ci], 0.0))

    parts = []
    for co in range(cout):
        # Unrolled VPU channel contraction (tiny Cin/Cout; weights from SMEM,
        # each scalar read once).
        acc = ys[0] * w_ref[co * cin]
        for ci in range(1, cin):
            acc = acc + ys[ci] * w_ref[co * cin + ci]      # (N, H*W)
        # 2x2 sum-pool + (hh, wh) compaction as one MXU matmul (1/4 is in w).
        parts.append(jnp.dot(acc, pool, preferred_element_type=jnp.float32))

    # Single lane-dense store of the (N, Cout*Hh*Wh) block.
    o_ref[...] = jnp.concatenate(parts, axis=1).astype(o_ref.dtype)


def transition_block(x_nchw, gamma, beta, running_mean, running_var, conv_w,
                     eps=1e-5):
    """x: (N,Cin,H,W); conv_w: (Cout,Cin,1,1) -> (N, Cout, H//2, W//2) NCHW."""
    N, Cin, H, W = x_nchw.shape
    Cout = conv_w.shape[0]
    assert H % 2 == 0 and W % 2 == 0
    Hh, Wh = H // 2, W // 2
    HW, HhWh = H * W, Hh * Wh

    # Fuse BN affine; fold the 2x2 avg-pool divisor into the conv weight.
    scale = (gamma / jnp.sqrt(running_var + eps)).astype(jnp.float32)      # (Cin,)
    shift = (beta - running_mean * scale).astype(jnp.float32)              # (Cin,)
    w = (conv_w.reshape(Cout, Cin) * 0.25).reshape(Cout * Cin).astype(jnp.float32)

    # Constant pool/compaction matrix: P[h*W+w, hh*Wh+wh] = 1 iff h//2==hh, w//2==wh.
    src_h = jnp.arange(HW, dtype=jnp.int32) // W
    src_w = jnp.arange(HW, dtype=jnp.int32) % W
    dst_h = jnp.arange(HhWh, dtype=jnp.int32) // Wh
    dst_w = jnp.arange(HhWh, dtype=jnp.int32) % Wh
    pool_mat = (((src_h[:, None] // 2) == dst_h[None, :]) &
                ((src_w[:, None] // 2) == dst_w[None, :])).astype(jnp.float32)

    # Free, contiguous reshape: NCHW -> (N, Cin*H*W); no HBM transpose.
    x_flat = x_nchw.reshape(N, Cin * HW).astype(jnp.float32)

    out_flat = pl.pallas_call(
        _transition_kernel,
        out_shape=jax.ShapeDtypeStruct((N, Cout * HhWh), jnp.float32),
        in_specs=[
            pl.BlockSpec(memory_space=pltpu.MemorySpace.SMEM),   # scale
            pl.BlockSpec(memory_space=pltpu.MemorySpace.SMEM),   # shift
            pl.BlockSpec(memory_space=pltpu.MemorySpace.SMEM),   # w
            pl.BlockSpec(memory_space=pltpu.MemorySpace.VMEM),   # x (whole batch)
            pl.BlockSpec(memory_space=pltpu.MemorySpace.VMEM),   # pool matrix
        ],
        out_specs=pl.BlockSpec(memory_space=pltpu.MemorySpace.VMEM),
    )(scale, shift, w, x_flat, pool_mat)

    # Contiguous (free) reshape back to pooled NCHW.
    return out_flat.reshape(N, Cout, Hh, Wh)


def _reference(x_nchw, gamma, beta, running_mean, running_var, conv_w, eps=1e-5):
    # Pure-JAX reference of the PyTorch forward (inference-mode BN).
    xn = (x_nchw - running_mean[None, :, None, None]) / jnp.sqrt(
        running_var[None, :, None, None] + eps)
    xn = xn * gamma[None, :, None, None] + beta[None, :, None, None]
    xr = jnp.maximum(xn, 0.0)
    w = conv_w.reshape(conv_w.shape[0], conv_w.shape[1])           # (Cout, Cin)
    conv = jnp.einsum('nchw,oc->nohw', xr, w)
    N, Co, H, W = conv.shape
    pooled = conv.reshape(N, Co, H // 2, 2, W // 2, 2).mean(axis=(3, 5))
    return pooled


if __name__ == "__main__":
    key = jax.random.PRNGKey(0)
    k1, k2, k3, k4, k5 = jax.random.split(key, 5)

    N, Cin, H, W = 2, 4, 16, 16
    Cout = 2  # transition layer reduces channel count

    x = jax.random.normal(k1, (N, Cin, H, W), dtype=jnp.float32)

    # Deterministic synthetic parameters (not a checkpoint load).
    gamma = 1.0 + 0.1 * jax.random.normal(k2, (Cin,), dtype=jnp.float32)
    beta = 0.1 * jax.random.normal(k3, (Cin,), dtype=jnp.float32)
    running_mean = 0.05 * jax.random.normal(k4, (Cin,), dtype=jnp.float32)
    running_var = jnp.abs(1.0 + 0.1 * jax.random.normal(k5, (Cin,),
                                                        dtype=jnp.float32))
    conv_w = jax.random.normal(jax.random.PRNGKey(42),
                               (Cout, Cin, 1, 1), dtype=jnp.float32) * 0.1

    out = transition_block(x, gamma, beta, running_mean, running_var, conv_w)
    out = jax.block_until_ready(out)

    ref = _reference(x, gamma, beta, running_mean, running_var, conv_w)
    assert out.shape == (N, Cout, H // 2, W // 2), out.shape
    # Linear-op reordering (pool via matmul, weight-folded divisor) only
    # differs by fp reassociation.
    assert jnp.allclose(out, ref, atol=1e-4, rtol=1e-4), \
        float(jnp.max(jnp.abs(out - ref)))

    print("KERNEL_OK")
</pallas_src>

<mosaic_0001>
module attributes {stable_mosaic.version = 11 : i64} {
  func.func @_transition_kernel(%arg0: memref<4xf32, #tpu.memory_space<smem>>, %arg1: memref<4xf32, #tpu.memory_space<smem>>, %arg2: memref<8xf32, #tpu.memory_space<smem>>, %arg3: memref<2x1024xf32, #tpu.memory_space<vmem>>, %arg4: memref<256x64xf32, #tpu.memory_space<vmem>>, %arg5: memref<2x128xf32, #tpu.memory_space<vmem>>) attributes {dimension_semantics = [], scalar_prefetch = 0 : i64, scratch_operands = 0 : i64, tpu.core_type = #tpu.core_type<tc>} {
    %c0 = arith.constant 0 : index
    %c0_0 = arith.constant 0 : index
    %0 = vector.load %arg4[%c0, %c0_0] : memref<256x64xf32, #tpu.memory_space<vmem>>, vector<256x64xf32>
    %c0_1 = arith.constant 0 : index
    %c0_2 = arith.constant 0 : index
    %1 = vector.load %arg3[%c0_1, %c0_2] : memref<2x1024xf32, #tpu.memory_space<vmem>>, vector<2x256xf32>
    %c0_3 = arith.constant 0 : index
    %2 = memref.load %arg0[%c0_3] : memref<4xf32, #tpu.memory_space<smem>>
    %3 = vector.broadcast %2 : f32 to vector<2x256xf32>
    %4 = arith.mulf %1, %3 : vector<2x256xf32>
    %c0_4 = arith.constant 0 : index
    %5 = memref.load %arg1[%c0_4] : memref<4xf32, #tpu.memory_space<smem>>
    %6 = vector.broadcast %5 : f32 to vector<2x256xf32>
    %7 = arith.addf %4, %6 : vector<2x256xf32>
    %cst = arith.constant 0.000000e+00 : f32
    %8 = vector.broadcast %cst : f32 to vector<2x256xf32>
    %9 = arith.maximumf %7, %8 : vector<2x256xf32>
    %c0_5 = arith.constant 0 : index
    %c256 = arith.constant 256 : index
    %10 = vector.load %arg3[%c0_5, %c256] : memref<2x1024xf32, #tpu.memory_space<vmem>>, vector<2x256xf32>
    %c1 = arith.constant 1 : index
    %11 = memref.load %arg0[%c1] : memref<4xf32, #tpu.memory_space<smem>>
    %12 = vector.broadcast %11 : f32 to vector<2x256xf32>
    %13 = arith.mulf %10, %12 : vector<2x256xf32>
    %c1_6 = arith.constant 1 : index
    %14 = memref.load %arg1[%c1_6] : memref<4xf32, #tpu.memory_space<smem>>
    %15 = vector.broadcast %14 : f32 to vector<2x256xf32>
    %16 = arith.addf %13, %15 : vector<2x256xf32>
    %cst_7 = arith.constant 0.000000e+00 : f32
    %17 = vector.broadcast %cst_7 : f32 to vector<2x256xf32>
    %18 = arith.maximumf %16, %17 : vector<2x256xf32>
    %c0_8 = arith.constant 0 : index
    %c512 = arith.constant 512 : index
    %19 = vector.load %arg3[%c0_8, %c512] : memref<2x1024xf32, #tpu.memory_space<vmem>>, vector<2x256xf32>
    %c2 = arith.constant 2 : index
    %20 = memref.load %arg0[%c2] : memref<4xf32, #tpu.memory_space<smem>>
    %21 = vector.broadcast %20 : f32 to vector<2x256xf32>
    %22 = arith.mulf %19, %21 : vector<2x256xf32>
    %c2_9 = arith.constant 2 : index
    %23 = memref.load %arg1[%c2_9] : memref<4xf32, #tpu.memory_space<smem>>
    %24 = vector.broadcast %23 : f32 to vector<2x256xf32>
    %25 = arith.addf %22, %24 : vector<2x256xf32>
    %cst_10 = arith.constant 0.000000e+00 : f32
    %26 = vector.broadcast %cst_10 : f32 to vector<2x256xf32>
    %27 = arith.maximumf %25, %26 : vector<2x256xf32>
    %c0_11 = arith.constant 0 : index
    %c768 = arith.constant 768 : index
    %28 = vector.load %arg3[%c0_11, %c768] : memref<2x1024xf32, #tpu.memory_space<vmem>>, vector<2x256xf32>
    %c3 = arith.constant 3 : index
    %29 = memref.load %arg0[%c3] : memref<4xf32, #tpu.memory_space<smem>>
    %30 = vector.broadcast %29 : f32 to vector<2x256xf32>
    %31 = arith.mulf %28, %30 : vector<2x256xf32>
    %c3_12 = arith.constant 3 : index
    %32 = memref.load %arg1[%c3_12] : memref<4xf32, #tpu.memory_space<smem>>
    %33 = vector.broadcast %32 : f32 to vector<2x256xf32>
    %34 = arith.addf %31, %33 : vector<2x256xf32>
    %cst_13 = arith.constant 0.000000e+00 : f32
    %35 = vector.broadcast %cst_13 : f32 to vector<2x256xf32>
    %36 = arith.maximumf %34, %35 : vector<2x256xf32>
    %c0_14 = arith.constant 0 : index
    %37 = memref.load %arg2[%c0_14] : memref<8xf32, #tpu.memory_space<smem>>
    %38 = vector.broadcast %37 : f32 to vector<2x256xf32>
    %39 = arith.mulf %9, %38 : vector<2x256xf32>
    %c1_15 = arith.constant 1 : index
    %40 = memref.load %arg2[%c1_15] : memref<8xf32, #tpu.memory_space<smem>>
    %41 = vector.broadcast %40 : f32 to vector<2x256xf32>
    %42 = arith.mulf %18, %41 : vector<2x256xf32>
    %43 = arith.addf %39, %42 : vector<2x256xf32>
    %c2_16 = arith.constant 2 : index
    %44 = memref.load %arg2[%c2_16] : memref<8xf32, #tpu.memory_space<smem>>
    %45 = vector.broadcast %44 : f32 to vector<2x256xf32>
    %46 = arith.mulf %27, %45 : vector<2x256xf32>
    %47 = arith.addf %43, %46 : vector<2x256xf32>
    %c3_17 = arith.constant 3 : index
    %48 = memref.load %arg2[%c3_17] : memref<8xf32, #tpu.memory_space<smem>>
    %49 = vector.broadcast %48 : f32 to vector<2x256xf32>
    %50 = arith.mulf %36, %49 : vector<2x256xf32>
    %51 = arith.addf %47, %50 : vector<2x256xf32>
    %cst_18 = arith.constant dense<0.000000e+00> : vector<2x64xf32>
    %52 = tpu.matmul %51, %0, %cst_18 {dimension_numbers = #tpu.dot_dimension_numbers<[1], [0], [0], [1], [0, 0, 1, 1], [], []>} : vector<2x256xf32>, vector<256x64xf32>, vector<2x64xf32> -> vector<2x64xf32>
    %c4 = arith.constant 4 : index
    %53 = memref.load %arg2[%c4] : memref<8xf32, #tpu.memory_space<smem>>
    %54 = vector.broadcast %53 : f32 to vector<2x256xf32>
    %55 = arith.mulf %9, %54 : vector<2x256xf32>
    %c5 = arith.constant 5 : index
    %56 = memref.load %arg2[%c5] : memref<8xf32, #tpu.memory_space<smem>>
    %57 = vector.broadcast %56 : f32 to vector<2x256xf32>
    %58 = arith.mulf %18, %57 : vector<2x256xf32>
    %59 = arith.addf %55, %58 : vector<2x256xf32>
    %c6 = arith.constant 6 : index
    %60 = memref.load %arg2[%c6] : memref<8xf32, #tpu.memory_space<smem>>
    %61 = vector.broadcast %60 : f32 to vector<2x256xf32>
    %62 = arith.mulf %27, %61 : vector<2x256xf32>
    %63 = arith.addf %59, %62 : vector<2x256xf32>
    %c7 = arith.constant 7 : index
    %64 = memref.load %arg2[%c7] : memref<8xf32, #tpu.memory_space<smem>>
    %65 = vector.broadcast %64 : f32 to vector<2x256xf32>
    %66 = arith.mulf %36, %65 : vector<2x256xf32>
    %67 = arith.addf %63, %66 : vector<2x256xf32>
    %cst_19 = arith.constant dense<0.000000e+00> : vector<2x64xf32>
    %68 = tpu.matmul %67, %0, %cst_19 {dimension_numbers = #tpu.dot_dimension_numbers<[1], [0], [0], [1], [0, 0, 1, 1], [], []>} : vector<2x256xf32>, vector<256x64xf32>, vector<2x64xf32> -> vector<2x64xf32>
    %69 = tpu.concatenate %52, %68 in 1 : vector<2x64xf32>, vector<2x64xf32> -> vector<2x128xf32>
    %c0_20 = arith.constant 0 : index
    %c0_21 = arith.constant 0 : index
    %70 = vector.load %arg5[%c0_20, %c0_21] : memref<2x128xf32, #tpu.memory_space<vmem>>, vector<2x128xf32>
    tpu.vector_store %arg5[%c0_20, %c0_21], %69 {strides = array<i32>} : memref<2x128xf32, #tpu.memory_space<vmem>>, vector<2x128xf32>,
    return
  }
}

</mosaic_0001>

<llo_original>
// kernel: tpu_custom_call.1
$region0: #{tpu_custom_call.1}
  #allocation0 [shape = 'u32[]', space=smem, size = 0x4, offset = 0x4, fixed_abs, tag = 'smem constant byte address 0x4 - core index']
  #allocation1 [shape = 'u32[144,128]{1,0:T(1,128)}', space=vmem, size = 0x12000, scoped, tag = 'internal scratch']
  %s0 = inlined_call_operand.vmem [shape: f32[4], index: 0, kind: input, shape index: {}]
  %s1 = inlined_call_operand.vmem [shape: f32[4], index: 1, kind: input, shape index: {}]
  %s2 = inlined_call_operand.vmem [shape: f32[8], index: 2, kind: input, shape index: {}]
  %s3 = inlined_call_operand.vmem [shape: f32[2,1024], index: 3, kind: input, shape index: {}]
  %s4 = inlined_call_operand.vmem [shape: f32[256,64], index: 4, kind: input, shape index: {}]
  %s5 = inlined_call_operand.hbm [shape: f32[2,128], index: 5, kind: output, shape index: {}]
  %s6 = sld [smem:[#allocation0]]
  $region42: #{tpu_custom_call.1} parent=0
    _
  %s8 = ssub.s32 1, %s6
  %s9 = scalar_select 0, %s8, %s6
  $region1: #{tpu_custom_call.1} parent=0
    #allocation2 [shape = 'u8[512]{0}', space=smem, size = 0x200, scoped, tag = 'input window, operand 0, single buffered']
    #allocation3 [shape = 's32[1]{0}', space=sflag, size = 0x4, scoped, tag = 'scoped memory for tpu_custom_call.1']
    #allocation4 [shape = 's32[1]{0}', space=sflag, size = 0x4, scoped, tag = 'scoped memory for tpu_custom_call.1']
    #allocation5 [shape = 'u8[512]{0}', space=smem, size = 0x200, scoped, tag = 'input window, operand 1, single buffered']
    #allocation6 [shape = 's32[1]{0}', space=sflag, size = 0x4, scoped, tag = 'scoped memory for tpu_custom_call.1']
    #allocation7 [shape = 'u8[512]{0}', space=smem, size = 0x200, scoped, tag = 'input window, operand 2, single buffered']
    #allocation8 [shape = 'u8[1024]{0}', space=vmem, size = 0x400, scoped, tag = 'output window, operand 0, single buffered']
    %10 = vsyncpa [#allocation4], 0
    %11 = vsyncpa [#allocation6], 0
    %12 = vsyncpa [#allocation3], 0
    // Predicated region
    $region2: #{tpu_custom_call.1} parent=1 // pred_check
      _
    $region3: #{tpu_custom_call.1} parent=1 // pred_check_branch
      %14 = sbr.rel (0) target = $region5
    $region4: #{tpu_custom_call.1} parent=1 // pred_region
      %s16 = ssub.s32 16, 16
      %17 = vsyncadd [#allocation4], %s16
      %s19 = sshll.u32 %s0, 4
      %s20 = int_to_ptr.vmem [resolvable:$true] %s19
      %22 = dma.vmem_to_smem %s20, 16, [#allocation2], [#allocation4]
    $region5: #{tpu_custom_call.1} parent=1 // pred_fallthru
      _
    // Predicated region
    $region6: #{tpu_custom_call.1} parent=1 // pred_check
      _
    $region7: #{tpu_custom_call.1} parent=1 // pred_check_branch
      %24 = sbr.rel (0) target = $region9
    $region8: #{tpu_custom_call.1} parent=1 // pred_region
      %s26 = ssub.s32 16, 16
      %27 = vsyncadd [#allocation6], %s26
      %s29 = sshll.u32 %s1, 4
      %s30 = int_to_ptr.vmem [resolvable:$true] %s29
      %32 = dma.vmem_to_smem %s30, 16, [#allocation5], [#allocation6]
    $region9: #{tpu_custom_call.1} parent=1 // pred_fallthru
      _
    // Predicated region
    $region10: #{tpu_custom_call.1} parent=1 // pred_check
      _
    $region11: #{tpu_custom_call.1} parent=1 // pred_check_branch
      %34 = sbr.rel (0) target = $region13
    $region12: #{tpu_custom_call.1} parent=1 // pred_region
      %s36 = ssub.s32 16, 16
      %37 = vsyncadd [#allocation6], %s36
      %s39 = sshll.u32 %s2, 4
      %s40 = int_to_ptr.vmem [resolvable:$true] %s39
      %42 = dma.vmem_to_smem %s40, 16, [#allocation7], [#allocation6]
    $region13: #{tpu_custom_call.1} parent=1 // pred_fallthru
      _
    // Predicated region
    $region14: #{tpu_custom_call.1} parent=1 // pred_check
      _
    $region15: #{tpu_custom_call.1} parent=1 // pred_check_branch
      %44 = sbr.rel (0) target = $region17
    $region16: #{tpu_custom_call.1} parent=1 // pred_region
      _
    $region17: #{tpu_custom_call.1} parent=1 // pred_fallthru
      _
    // Predicated region
    $region18: #{tpu_custom_call.1} parent=1 // pred_check
      _
    $region19: #{tpu_custom_call.1} parent=1 // pred_check_branch
      %46 = sbr.rel (0) target = $region21
    $region20: #{tpu_custom_call.1} parent=1 // pred_region
      _
    $region21: #{tpu_custom_call.1} parent=1 // pred_fallthru
      _
    // Predicated region
    $region22: #{tpu_custom_call.1} parent=1 // pred_check
      _
    $region23: #{tpu_custom_call.1} parent=1 // pred_check_branch
      %48 = sbr.rel (0) target = $region25
    $region24: #{tpu_custom_call.1} parent=1 // pred_region
      %49 = dma.done [#allocation4], 16
    $region25: #{tpu_custom_call.1} parent=1 // pred_fallthru
      _
    // Predicated region
    $region26: #{tpu_custom_call.1} parent=1 // pred_check
      _
    $region27: #{tpu_custom_call.1} parent=1 // pred_check_branch
      %51 = sbr.rel (0) target = $region29
    $region28: #{tpu_custom_call.1} parent=1 // pred_region
      %52 = dma.done [#allocation6], 16
    $region29: #{tpu_custom_call.1} parent=1 // pred_fallthru
      _
    // Predicated region
    $region30: #{tpu_custom_call.1} parent=1 // pred_check
      _
    $region31: #{tpu_custom_call.1} parent=1 // pred_check_branch
      %54 = sbr.rel (0) target = $region33
    $region32: #{tpu_custom_call.1} parent=1 // pred_region
      %55 = dma.done [#allocation6], 16
    $region33: #{tpu_custom_call.1} parent=1 // pred_fallthru
      _
    %56 = sfence
    %v57 = vld [vmem:[%s4] sm:$0xff]
    %v58 = vld [vmem:[%s4 + $0x8] sm:$0xff]
    %v59 = vld [vmem:[%s4 + $0x10] sm:$0xff]
    %v60 = vld [vmem:[%s4 + $0x18] sm:$0xff]
    %v61 = vld [vmem:[%s4 + $0x20] sm:$0xff]
    %v62 = vld [vmem:[%s4 + $0x28] sm:$0xff]
    %v63 = vld [vmem:[%s4 + $0x30] sm:$0xff]
    %v64 = vld [vmem:[%s4 + $0x38] sm:$0xff]
    %v65 = vld [vmem:[%s4 + $0x40] sm:$0xff]
    %v66 = vld [vmem:[%s4 + $0x48] sm:$0xff]
    %v67 = vld [vmem:[%s4 + $0x50] sm:$0xff]
    %v68 = vld [vmem:[%s4 + $0x58] sm:$0xff]
    %v69 = vld [vmem:[%s4 + $0x60] sm:$0xff]
    %v70 = vld [vmem:[%s4 + $0x68] sm:$0xff]
    %v71 = vld [vmem:[%s4 + $0x70] sm:$0xff]
    %v72 = vld [vmem:[%s4 + $0x78] sm:$0xff]
    %v73 = vld [vmem:[%s4 + $0x80] sm:$0xff]
    %v74 = vld [vmem:[%s4 + $0x88] sm:$0xff]
    %v75 = vld [vmem:[%s4 + $0x90] sm:$0xff]
    %v76 = vld [vmem:[%s4 + $0x98] sm:$0xff]
    %v77 = vld [vmem:[%s4 + $0xa0] sm:$0xff]
    %v78 = vld [vmem:[%s4 + $0xa8] sm:$0xff]
    %v79 = vld [vmem:[%s4 + $0xb0] sm:$0xff]
    %v80 = vld [vmem:[%s4 + $0xb8] sm:$0xff]
    %v81 = vld [vmem:[%s4 + $0xc0] sm:$0xff]
    %v82 = vld [vmem:[%s4 + $0xc8] sm:$0xff]
    %v83 = vld [vmem:[%s4 + $0xd0] sm:$0xff]
    %v84 = vld [vmem:[%s4 + $0xd8] sm:$0xff]
    %v85 = vld [vmem:[%s4 + $0xe0] sm:$0xff]
    %v86 = vld [vmem:[%s4 + $0xe8] sm:$0xff]
    %v87 = vld [vmem:[%s4 + $0xf0] sm:$0xff]
    %v88 = vld [vmem:[%s4 + $0xf8] sm:$0xff]
    %v89 = vld [vmem:[%s3] sm:$0xf]
    %s90 = sld [smem:[#allocation2]]
    %v91 = vstv %s90
    %v92 = vmul.f32 %v89, %v91
    %s93 = sld [smem:[#allocation5]]
    %v94 = vstv %s93
    %v95 = vadd.f32 %v92, %v94
    %v96 = vmax.f32 %v95, 0.0
    %v97 = vld [vmem:[%s3 + $0x4] sm:$0xf]
    %s98 = sld [smem:[#allocation2 + $0x1]]
    %v99 = vstv %s98
    %v100 = vmul.f32 %v97, %v99
    %s101 = sld [smem:[#allocation5 + $0x1]]
    %v102 = vstv %s101
    %v103 = vadd.f32 %v100, %v102
    %v104 = vmax.f32 %v103, 0.0
    %v105 = vld [vmem:[%s3 + $0x8] sm:$0xf]
    %s106 = sld [smem:[#allocation2 + $0x2]]
    %v107 = vstv %s106
    %v108 = vmul.f32 %v105, %v107
    %s109 = sld [smem:[#allocation5 + $0x2]]
    %v110 = vstv %s109
    %v111 = vadd.f32 %v108, %v110
    %v112 = vmax.f32 %v111, 0.0
    %v113 = vld [vmem:[%s3 + $0xc] sm:$0xf]
    %s114 = sld [smem:[#allocation2 + $0x3]]
    %v115 = vstv %s114
    %v116 = vmul.f32 %v113, %v115
    %s117 = sld [smem:[#allocation5 + $0x3]]
    %v118 = vstv %s117
    %v119 = vadd.f32 %v116, %v118
    %v120 = vmax.f32 %v119, 0.0
    %s121 = sld [smem:[#allocation7]]
    %v122 = vstv %s121
    %v123 = vmul.f32 %v96, %v122
    %s124 = sld [smem:[#allocation7 + $0x1]]
    %v125 = vstv %s124
    %v126 = vmul.f32 %v104, %v125
    %v127 = vadd.f32 %v123, %v126
    %s128 = sld [smem:[#allocation7 + $0x2]]
    %v129 = vstv %s128
    %v130 = vmul.f32 %v112, %v129
    %v131 = vadd.f32 %v127, %v130
    %s132 = sld [smem:[#allocation7 + $0x3]]
    %v133 = vstv %s132
    %v134 = vmul.f32 %v120, %v133
    %v135 = vadd.f32 %v131, %v134
    %v138 = vunpack.c.l.s4 1983009808
    %v139 = vunpack.c.0.s8 %v138
    %v140 = vlaneseq
    %v141 = vshrl.u32 %v140, 7
    %v142 = vsub.s32 %v139, %v141
    %v143 = vrot.slane %v135, %v142
    %v144 = vcombine.high %v143, %v143
    %147 = vmatprep.subr.mxu0 0.0
    %148 = vmatpush1.msra.mxu0 %v57
    %149 = vmatprep.subr.mxu0 0.0
    %150 = vmatpush1.msra.mxu0 %v58
    %151 = vmatprep.subr.mxu0 0.0
    %152 = vmatpush1.msra.mxu0 %v59
    %153 = vmatprep.subr.mxu0 0.0
    %154 = vmatpush1.msra.mxu0 %v60
    %155 = vmatprep.subr.mxu0 0.0
    %156 = vmatpush1.msra.mxu0 %v61
    %157 = vmatprep.subr.mxu0 0.0
    %158 = vmatpush1.msra.mxu0 %v62
    %159 = vmatprep.subr.mxu0 0.0
    %160 = vmatpush1.msra.mxu0 %v63
    %161 = vmatprep.subr.mxu0 0.0
    %162 = vmatpush1.msra.mxu0 %v64
    %163 = vmatprep.subr.mxu0 0.0
    %164 = vmatpush1.msra.mxu0 %v65
    %165 = vmatprep.subr.mxu0 0.0
    %166 = vmatpush1.msra.mxu0 %v66
    %167 = vmatprep.subr.mxu0 0.0
    %168 = vmatpush1.msra.mxu0 %v67
    %169 = vmatprep.subr.mxu0 0.0
    %170 = vmatpush1.msra.mxu0 %v68
    %171 = vmatprep.subr.mxu0 0.0
    %172 = vmatpush1.msra.mxu0 %v69
    %173 = vmatprep.subr.mxu0 0.0
    %174 = vmatpush1.msra.mxu0 %v70
    %175 = vmatprep.subr.mxu0 0.0
    %176 = vmatpush1.msra.mxu0 %v71
    %177 = vmatprep.subr.mxu0 0.0
    %178 = vmatpush1.msra.mxu0 %v72
    %179 = vmatprep.subr.mxu0 0.0
    %180 = vmatpush1.msra.mxu0 %v73
    %181 = vmatprep.subr.mxu0 0.0
    %182 = vmatpush1.msra.mxu0 %v74
    %183 = vmatprep.subr.mxu0 0.0
    %184 = vmatpush1.msra.mxu0 %v75
    %185 = vmatprep.subr.mxu0 0.0
    %186 = vmatpush1.msra.mxu0 %v76
    %187 = vmatprep.subr.mxu0 0.0
    %188 = vmatpush1.msra.mxu0 %v77
    %189 = vmatprep.subr.mxu0 0.0
    %190 = vmatpush1.msra.mxu0 %v78
    %191 = vmatprep.subr.mxu0 0.0
    %192 = vmatpush1.msra.mxu0 %v79
    %193 = vmatprep.subr.mxu0 0.0
    %194 = vmatpush1.msra.mxu0 %v80
    %195 = vmatprep.subr.mxu0 0.0
    %196 = vmatpush1.msra.mxu0 %v81
    %197 = vmatprep.subr.mxu0 0.0
    %198 = vmatpush1.msra.mxu0 %v82
    %199 = vmatprep.subr.mxu0 0.0
    %200 = vmatpush1.msra.mxu0 %v83
    %201 = vmatprep.subr.mxu0 0.0
    %202 = vmatpush1.msra.mxu0 %v84
    %203 = vmatprep.subr.mxu0 0.0
    %204 = vmatpush1.msra.mxu0 %v85
    %205 = vmatprep.subr.mxu0 0.0
    %206 = vmatpush1.msra.mxu0 %v86
    %207 = vmatprep.subr.mxu0 0.0
    %208 = vmatpush1.msra.mxu0 %v87
    %209 = vmatprep.subr.mxu0 0.0
    %210 = vmatpush1.msra.mxu0 %v88
    %211 = vmatprep.mubr.f32.mxu0 %v144
    %212 = vmatmul.mubr.f32.gmra.mrb[0].mxu0 %v143
    %v213 = vpop.f32.mrb[0].mxu0
    %v214 = vadd.f32 0.0, %v213
    %v215 = vpop.f32.mrb[0].mxu0
    %216 = vdwg.mxu0
    %s217 = sld [smem:[#allocation7 + $0x4]]
    %v218 = vstv %s217
    %v219 = vmul.f32 %v96, %v218
    %s220 = sld [smem:[#allocation7 + $0x5]]
    %v221 = vstv %s220
    %v222 = vmul.f32 %v104, %v221
    %v223 = vadd.f32 %v219, %v222
    %s224 = sld [smem:[#allocation7 + $0x6]]
    %v225 = vstv %s224
    %v226 = vmul.f32 %v112, %v225
    %v227 = vadd.f32 %v223, %v226
    %s228 = sld [smem:[#allocation7 + $0x7]]
    %v229 = vstv %s228
    %v230 = vmul.f32 %v120, %v229
    %v231 = vadd.f32 %v227, %v230
    %v234 = vunpack.c.l.s4 1983009808
    %v235 = vunpack.c.0.s8 %v234
    %v236 = vlaneseq
    %v237 = vshrl.u32 %v236, 7
    %v238 = vsub.s32 %v235, %v237
    %v239 = vrot.slane %v231, %v238
    %v240 = vcombine.high %v239, %v239
    %243 = vmatprep.subr.mxu0 0.0
    %244 = vmatpush1.msra.mxu0 %v57
    %245 = vmatprep.subr.mxu0 0.0
    %246 = vmatpush1.msra.mxu0 %v58
    %247 = vmatprep.subr.mxu0 0.0
    %248 = vmatpush1.msra.mxu0 %v59
    %249 = vmatprep.subr.mxu0 0.0
    %250 = vmatpush1.msra.mxu0 %v60
    %251 = vmatprep.subr.mxu0 0.0
    %252 = vmatpush1.msra.mxu0 %v61
    %253 = vmatprep.subr.mxu0 0.0
    %254 = vmatpush1.msra.mxu0 %v62
    %255 = vmatprep.subr.mxu0 0.0
    %256 = vmatpush1.msra.mxu0 %v63
    %257 = vmatprep.subr.mxu0 0.0
    %258 = vmatpush1.msra.mxu0 %v64
    %259 = vmatprep.subr.mxu0 0.0
    %260 = vmatpush1.msra.mxu0 %v65
    %261 = vmatprep.subr.mxu0 0.0
    %262 = vmatpush1.msra.mxu0 %v66
    %263 = vmatprep.subr.mxu0 0.0
    %264 = vmatpush1.msra.mxu0 %v67
    %265 = vmatprep.subr.mxu0 0.0
    %266 = vmatpush1.msra.mxu0 %v68
    %267 = vmatprep.subr.mxu0 0.0
    %268 = vmatpush1.msra.mxu0 %v69
    %269 = vmatprep.subr.mxu0 0.0
    %270 = vmatpush1.msra.mxu0 %v70
    %271 = vmatprep.subr.mxu0 0.0
    %272 = vmatpush1.msra.mxu0 %v71
    %273 = vmatprep.subr.mxu0 0.0
    %274 = vmatpush1.msra.mxu0 %v72
    %275 = vmatprep.subr.mxu0 0.0
    %276 = vmatpush1.msra.mxu0 %v73
    %277 = vmatprep.subr.mxu0 0.0
    %278 = vmatpush1.msra.mxu0 %v74
    %279 = vmatprep.subr.mxu0 0.0
    %280 = vmatpush1.msra.mxu0 %v75
    %281 = vmatprep.subr.mxu0 0.0
    %282 = vmatpush1.msra.mxu0 %v76
    %283 = vmatprep.subr.mxu0 0.0
    %284 = vmatpush1.msra.mxu0 %v77
    %285 = vmatprep.subr.mxu0 0.0
    %286 = vmatpush1.msra.mxu0 %v78
    %287 = vmatprep.subr.mxu0 0.0
    %288 = vmatpush1.msra.mxu0 %v79
    %289 = vmatprep.subr.mxu0 0.0
    %290 = vmatpush1.msra.mxu0 %v80
    %291 = vmatprep.subr.mxu0 0.0
    %292 = vmatpush1.msra.mxu0 %v81
    %293 = vmatprep.subr.mxu0 0.0
    %294 = vmatpush1.msra.mxu0 %v82
    %295 = vmatprep.subr.mxu0 0.0
    %296 = vmatpush1.msra.mxu0 %v83
    %297 = vmatprep.subr.mxu0 0.0
    %298 = vmatpush1.msra.mxu0 %v84
    %299 = vmatprep.subr.mxu0 0.0
    %300 = vmatpush1.msra.mxu0 %v85
    %301 = vmatprep.subr.mxu0 0.0
    %302 = vmatpush1.msra.mxu0 %v86
    %303 = vmatprep.subr.mxu0 0.0
    %304 = vmatpush1.msra.mxu0 %v87
    %305 = vmatprep.subr.mxu0 0.0
    %306 = vmatpush1.msra.mxu0 %v88
    %307 = vmatprep.mubr.f32.mxu0 %v240
    %308 = vmatmul.mubr.f32.gmra.mrb[0].mxu0 %v239
    %v309 = vpop.f32.mrb[0].mxu0
    %v310 = vadd.f32 0.0, %v309
    %v311 = vpop.f32.mrb[0].mxu0
    %312 = vdwg.mxu0
    %314 = vrot.lane.b32.xlu0 %v310, 64
    %v315 = vpop.permute.xlu0 %314
    %vm317 = vcmask 523264
    %v318 = vsel %vm317, %v214, %v315
    %319 = vst [vmem:[#allocation8] sm:$0x3] %v318
    // Predicated region
    $region34: #{tpu_custom_call.1} parent=1 // pred_check
      _
    $region35: #{tpu_custom_call.1} parent=1 // pred_check_branch
      %321 = sbr.rel (0) target = $region37
    $region36: #{tpu_custom_call.1} parent=1 // pred_region
      %s323 = ssub.s32 32, 32
      %324 = vsyncadd [#allocation3], %s323
      %s326 = sshll.u32 [#allocation8], 4
      %s327 = int_to_ptr.vmem [resolvable:$true] %s326
      %329 = dma.vmem_to_hbm [thread:$0]  %s327, 32, %s5, [#allocation3]
    $region37: #{tpu_custom_call.1} parent=1 // pred_fallthru
      _
    // Predicated region
    $region38: #{tpu_custom_call.1} parent=1 // pred_check
      _
    $region39: #{tpu_custom_call.1} parent=1 // pred_check_branch
      %331 = sbr.rel (0) target = $region41
    $region40: #{tpu_custom_call.1} parent=1 // pred_region
      %332 = dma.done [#allocation3], 32
    $region41: #{tpu_custom_call.1} parent=1 // pred_fallthru
      _
    %333 = vsyncpa [#allocation3], 1
    %334 = vsyncpa [#allocation4], 1
    %335 = vsyncpa [#allocation6], 1

</llo_original>
